<compile_context>
chip_gen: v7x
topology: tpu7x:2x2x1
jax: 0.10.0
libtpu: 0.0.40
codegen_flags: <defaults>
</compile_context>

<pallas_src>
import jax
import jax.numpy as jnp
from jax import lax
from jax.experimental import pallas as pl
from jax.experimental.pallas import tpu as pltpu


IN_FEATURES = 128
HIDDEN = 32
OUT_FEATURES = 2

DEFAULT_TILE_B = 8192   # rows per grid step (multiple of 128); 4 MiB f32 x tile
MAX_TILE_B = 16384      # hard cap; 3 buffers x 8 MiB still fits every chip


def _round_up(n, m):
    return ((n + m - 1) // m) * m


def assistor_kernel(x_ref, w1_ref, b1_ref, w2t_ref, b2_ref, o_ref):
    # x: (TILE_B, 128) f32 or bf16;  w1: (128, 32) same dtype as x.
    x = x_ref[...]
    # Linear 1 (MXU, f32 accumulate) + bias + ReLU (VPU), all in f32.
    h = jnp.dot(x, w1_ref[...], preferred_element_type=jnp.float32)  # (TILE_B, 32)
    h = jnp.maximum(h + b1_ref[...], 0.0)
    # TODO(synk): verify with pl.lower_as_mlir that this transposed contraction
    # does not force an XLU relayout of the large (TILE_B, 32) h operand; if it
    # does, compute h @ w2 naturally and transpose only the small result.
    # TODO(synk): on v7x, if the 32-lane h epilogue reaches the critical path,
    # cast h to bf16 before the second dot (do NOT do this on v5e).
    # Linear 2, computed directly transposed so the output block is lane-dense
    # ((2, TILE_B): unmasked full-lane stores instead of 2-wide masked stores):
    #   y_t[o, b] = sum_k w2t[o, k] * h[b, k]
    y_t = lax.dot_general(
        w2t_ref[...], h,
        dimension_numbers=(((1,), (1,)), ((), ())),
        preferred_element_type=jnp.float32,
    )
    # bias (2, 1) broadcasts across lanes; tanh runs on the EUP slot.
    o_ref[...] = jnp.tanh(y_t + b2_ref[...]).astype(o_ref.dtype)


def _build_pallas_call(B, tile_b, x_dtype, triple_buffer_x):
    grid = (pl.cdiv(B, tile_b),)

    x_spec_kwargs = {}
    if triple_buffer_x:
        # 3-deep pipelining on the streamed x tiles hides DMA issue gaps.
        x_spec_kwargs["pipeline_mode"] = pl.Buffered(3)

    in_specs = [
        # streamed batch tiles of x (prefetch tile i+1 while computing tile i)
        pl.BlockSpec((tile_b, IN_FEATURES), lambda i: (i, 0), **x_spec_kwargs),
        # weights / biases: constant index_map -> VMEM-resident, never re-DMA'd
        pl.BlockSpec((IN_FEATURES, HIDDEN), lambda i: (0, 0)),
        pl.BlockSpec((1, HIDDEN), lambda i: (0, 0)),
        pl.BlockSpec((OUT_FEATURES, HIDDEN), lambda i: (0, 0)),
        pl.BlockSpec((OUT_FEATURES, 1), lambda i: (0, 0)),
    ]

    itemsize = jnp.dtype(x_dtype).itemsize
    x_tile_bytes = tile_b * IN_FEATURES * itemsize
    out_tile_bytes = OUT_FEATURES * tile_b * 4
    w_bytes = (IN_FEATURES * HIDDEN * itemsize
               + HIDDEN * OUT_FEATURES * 4 + HIDDEN * 4 + OUT_FEATURES * 4)
    # 3 x buffers + 2 output buffers + weights + 1 MiB slack for internal scratch.
    vmem_need = 3 * x_tile_bytes + 2 * out_tile_bytes + w_bytes + (1 << 20)
    vmem_limit = int(min(max(vmem_need, 16 << 20), 48 << 20))

    return pl.pallas_call(
        assistor_kernel,
        out_shape=jax.ShapeDtypeStruct((OUT_FEATURES, B), jnp.float32),
        grid=grid,
        in_specs=in_specs,
        # lane-dense (2, TILE_B) output tiles; ragged last block is masked.
        out_specs=pl.BlockSpec((OUT_FEATURES, tile_b), lambda i: (0, i)),
        compiler_params=pltpu.CompilerParams(
            dimension_semantics=("parallel",),   # megacore sharding on v7x
            vmem_limit_bytes=vmem_limit,
        ),
        cost_estimate=pl.CostEstimate(
            flops=2 * B * (IN_FEATURES * HIDDEN + HIDDEN * OUT_FEATURES),
            transcendentals=B * OUT_FEATURES,
            bytes_accessed=(B * IN_FEATURES * itemsize + w_bytes
                            + B * OUT_FEATURES * 4),
        ),
    )


def assistor_forward(x, w1, b1, w2, b2, *, tile_b=DEFAULT_TILE_B,
                     transpose_output=True):
    """Forward pass.  x: (B, 128) f32 or bf16.

    Returns (B, 2) f32, or the lane-dense (2, B) f32 layout when
    transpose_output=False (preferred if the consumer can accept it, since the
    final transpose is pure layout plumbing).
    """
    B = int(x.shape[0])
    assert x.shape[1] == IN_FEATURES

    # bf16 fast path only when x ALREADY arrives in bf16: casting an f32 x here
    # would add a standalone read+write HBM pass and make this bandwidth-bound
    # kernel slower, not faster.  Only the tiny (128, 32) w1 is matched to the
    # activation dtype (pre-cast once outside the hot path in production).
    if w1.dtype != x.dtype:
        w1 = jnp.asarray(w1, x.dtype)

    # Tile selection: large tiles amortize the ~0.35us/step grid overhead; if a
    # single step would cover all of B while B is big enough to split, halve the
    # tile so both v7x TensorCores get work on the "parallel" batch axis.
    tile_b = max(128, min(int(tile_b), MAX_TILE_B, _round_up(B, 128)))
    tile_b = _round_up(tile_b, 128)
    if pl.cdiv(B, tile_b) < 2 and B > 2 * 128:
        tile_b = _round_up(pl.cdiv(B, 2), 128)

    b1_row = jnp.asarray(b1, jnp.float32).reshape(1, HIDDEN)           # (1, 32)
    w2_t = jnp.asarray(w2, jnp.float32).T                              # (2, 32)
    b2_col = jnp.asarray(b2, jnp.float32).reshape(OUT_FEATURES, 1)     # (2, 1)

    args = (x, w1, b1_row, w2_t, b2_col)
    try:
        out_t = _build_pallas_call(B, tile_b, x.dtype, True)(*args)
    except Exception:
        # pl.Buffered / pipeline_mode unsupported on this jax build: fall back
        # to the default 2-deep pipeline (same semantics).
        out_t = _build_pallas_call(B, tile_b, x.dtype, False)(*args)

    if transpose_output:
        # Layout plumbing only; keep inside the caller's jit (or use the (2, B)
        # layout directly) so XLA can fuse it away.
        return out_t.T
    return out_t


def init_params(key):
    """Deterministic init mimicking nn.Linear's U(-1/sqrt(fan_in), 1/sqrt(fan_in))."""
    k1, k2, k3, k4 = jax.random.split(key, 4)
    bound1 = 1.0 / jnp.sqrt(jnp.float32(IN_FEATURES))
    bound2 = 1.0 / jnp.sqrt(jnp.float32(HIDDEN))
    # Stored as (in_features, out_features) == PyTorch weight.T
    w1 = jax.random.uniform(k1, (IN_FEATURES, HIDDEN), jnp.float32, -bound1, bound1)
    b1 = jax.random.uniform(k2, (HIDDEN,), jnp.float32, -bound1, bound1)
    w2 = jax.random.uniform(k3, (HIDDEN, OUT_FEATURES), jnp.float32, -bound2, bound2)
    b2 = jax.random.uniform(k4, (OUT_FEATURES,), jnp.float32, -bound2, bound2)
    return w1, b1, w2, b2


def reference_forward(x, w1, b1, w2, b2):
    """Plain JAX reference matching the PyTorch forward."""
    h = jnp.maximum(x @ w1 + b1[None, :], 0.0)
    return jnp.tanh(h @ w2 + b2[None, :])


if __name__ == "__main__":
    key = jax.random.PRNGKey(0)
    k_params, k_x1, k_x2 = jax.random.split(key, 3)

    w1, b1, w2, b2 = init_params(k_params)

    # --- small batch, single (partial) tile, f32 input path ---
    batch = 8
    x = jax.random.normal(k_x1, (batch, IN_FEATURES), jnp.float32)
    out = jax.block_until_ready(assistor_forward(x, w1, b1, w2, b2))
    ref = reference_forward(x, w1, b1, w2, b2)
    assert out.shape == (batch, OUT_FEATURES)
    assert jnp.allclose(out, ref, atol=1e-4, rtol=1e-4)

    # --- multi-tile grid with a ragged (masked) tail: 200 rows, tile 128 -> 2 steps ---
    batch2 = 200
    x2 = jax.random.normal(k_x2, (batch2, IN_FEATURES), jnp.float32)
    out2 = jax.block_until_ready(assistor_forward(x2, w1, b1, w2, b2, tile_b=128))
    ref2 = reference_forward(x2, w1, b1, w2, b2)
    assert out2.shape == (batch2, OUT_FEATURES)
    assert jnp.allclose(out2, ref2, atol=1e-4, rtol=1e-4)

    # --- bf16 activations that already arrive as bf16 (no wrapper-side cast of x) ---
    x2_bf16 = x2.astype(jnp.bfloat16)
    out_bf16 = jax.block_until_ready(
        assistor_forward(x2_bf16, w1, b1, w2, b2, tile_b=128))
    ref_bf16 = reference_forward(x2_bf16.astype(jnp.float32), w1, b1, w2, b2)
    assert jnp.allclose(out_bf16, ref_bf16, atol=5e-2, rtol=5e-2)

    # --- lane-dense (2, B) output layout (skip the final transpose) ---
    out_t = jax.block_until_ready(
        assistor_forward(x2, w1, b1, w2, b2, tile_b=128, transpose_output=False))
    assert out_t.shape == (OUT_FEATURES, batch2)
    assert jnp.allclose(out_t.T, ref2, atol=1e-4, rtol=1e-4)

    print("KERNEL_OK")
</pallas_src>

<mosaic_0001>
module attributes {stable_mosaic.version = 11 : i64} {
  func.func @assistor_kernel(%arg0: i32, %arg1: memref<128x128xf32, #tpu.memory_space<vmem>>, %arg2: memref<128x32xf32, #tpu.memory_space<vmem>>, %arg3: memref<1x32xf32, #tpu.memory_space<vmem>>, %arg4: memref<2x32xf32, #tpu.memory_space<vmem>>, %arg5: memref<2x1xf32, #tpu.memory_space<vmem>>, %arg6: memref<2x128xf32, #tpu.memory_space<vmem>>) attributes {dimension_semantics = [#tpu.dimension_semantics<parallel>], iteration_bounds = array<i64: 1>, scalar_prefetch = 0 : i64, scratch_operands = 0 : i64, tpu.core_type = #tpu.core_type<tc>, window_params = [{transform_indices = @transform_0, window_bounds = array<i64: 128, 128>}, {pipeline_mode = #tpu.pipeline_mode<synchronous>, transform_indices = @transform_1, window_bounds = array<i64: 128, 32>}, {pipeline_mode = #tpu.pipeline_mode<synchronous>, transform_indices = @transform_2, window_bounds = array<i64: 1, 32>}, {pipeline_mode = #tpu.pipeline_mode<synchronous>, transform_indices = @transform_3, window_bounds = array<i64: 2, 32>}, {pipeline_mode = #tpu.pipeline_mode<synchronous>, transform_indices = @transform_4, window_bounds = array<i64: 2, 1>}, {transform_indices = @transform_5, window_bounds = array<i64: 2, 128>}]} {
    %c0 = arith.constant 0 : index
    %c0_0 = arith.constant 0 : index
    %0 = vector.load %arg1[%c0, %c0_0] : memref<128x128xf32, #tpu.memory_space<vmem>>, vector<128x128xf32>
    %c0_1 = arith.constant 0 : index
    %c0_2 = arith.constant 0 : index
    %1 = vector.load %arg2[%c0_1, %c0_2] : memref<128x32xf32, #tpu.memory_space<vmem>>, vector<128x32xf32>
    %cst = arith.constant dense<0.000000e+00> : vector<128x32xf32>
    %2 = tpu.matmul %0, %1, %cst {dimension_numbers = #tpu.dot_dimension_numbers<[1], [0], [0], [1], [0, 0, 1, 1], [], []>} : vector<128x128xf32>, vector<128x32xf32>, vector<128x32xf32> -> vector<128x32xf32>
    %c0_3 = arith.constant 0 : index
    %c0_4 = arith.constant 0 : index
    %3 = vector.load %arg3[%c0_3, %c0_4] : memref<1x32xf32, #tpu.memory_space<vmem>>, vector<1x32xf32>
    %4 = vector.broadcast %3 : vector<1x32xf32> to vector<128x32xf32>
    %5 = arith.addf %2, %4 : vector<128x32xf32>
    %cst_5 = arith.constant 0.000000e+00 : f32
    %6 = vector.broadcast %cst_5 : f32 to vector<128x32xf32>
    %7 = arith.maximumf %5, %6 : vector<128x32xf32>
    %c0_6 = arith.constant 0 : index
    %c0_7 = arith.constant 0 : index
    %8 = vector.load %arg4[%c0_6, %c0_7] : memref<2x32xf32, #tpu.memory_space<vmem>>, vector<2x32xf32>
    %cst_8 = arith.constant dense<0.000000e+00> : vector<2x128xf32>
    %9 = tpu.matmul %8, %7, %cst_8 {dimension_numbers = #tpu.dot_dimension_numbers<[1], [1], [0], [0], [0, 0, 1, 0], [], []>} : vector<2x32xf32>, vector<128x32xf32>, vector<2x128xf32> -> vector<2x128xf32>
    %c0_9 = arith.constant 0 : index
    %c0_10 = arith.constant 0 : index
    %10 = vector.load %arg5[%c0_9, %c0_10] : memref<2x1xf32, #tpu.memory_space<vmem>>, vector<2x1xf32>
    %11 = vector.broadcast %10 : vector<2x1xf32> to vector<2x128xf32>
    %12 = arith.addf %9, %11 : vector<2x128xf32>
    %13 = math.tanh %12 : vector<2x128xf32>
    %c0_11 = arith.constant 0 : index
    %c0_12 = arith.constant 0 : index
    %14 = vector.load %arg6[%c0_11, %c0_12] : memref<2x128xf32, #tpu.memory_space<vmem>>, vector<2x128xf32>
    tpu.vector_store %arg6[%c0_11, %c0_12], %13 {strides = array<i32>} : memref<2x128xf32, #tpu.memory_space<vmem>>, vector<2x128xf32>,
    return
  }
  func.func @transform_0(%arg0: i32) -> (i32, i32) {
    %c0_i32 = arith.constant 0 : i32
    %c0_i32_0 = arith.constant 0 : i32
    return %arg0, %c0_i32 : i32, i32
  }
  func.func @transform_1(%arg0: i32) -> (i32, i32) {
    %c0_i32 = arith.constant 0 : i32
    %c0_i32_0 = arith.constant 0 : i32
    %c0_i32_1 = arith.constant 0 : i32
    return %c0_i32, %c0_i32_0 : i32, i32
  }
  func.func @transform_2(%arg0: i32) -> (i32, i32) {
    %c0_i32 = arith.constant 0 : i32
    %c0_i32_0 = arith.constant 0 : i32
    %c0_i32_1 = arith.constant 0 : i32
    return %c0_i32, %c0_i32_0 : i32, i32
  }
  func.func @transform_3(%arg0: i32) -> (i32, i32) {
    %c0_i32 = arith.constant 0 : i32
    %c0_i32_0 = arith.constant 0 : i32
    %c0_i32_1 = arith.constant 0 : i32
    return %c0_i32, %c0_i32_0 : i32, i32
  }
  func.func @transform_4(%arg0: i32) -> (i32, i32) {
    %c0_i32 = arith.constant 0 : i32
    %c0_i32_0 = arith.constant 0 : i32
    %c0_i32_1 = arith.constant 0 : i32
    return %c0_i32, %c0_i32_0 : i32, i32
  }
  func.func @transform_5(%arg0: i32) -> (i32, i32) {
    %c0_i32 = arith.constant 0 : i32
    %c0_i32_0 = arith.constant 0 : i32
    return %c0_i32, %arg0 : i32, i32
  }
}

</mosaic_0001>

<llo_original>
// kernel: tpu_custom_call.1
$region0: #{tpu_custom_call.1}
  #allocation0 [shape = 'u32[]', space=smem, size = 0x4, offset = 0x4, fixed_abs, tag = 'smem constant byte address 0x4 - core index']
  #allocation1 [shape = 'u32[144,128]{1,0:T(1,128)}', space=vmem, size = 0x12000, scoped, tag = 'internal scratch']
  %s0 = inlined_call_operand.vmem [shape: f32[8,128], index: 0, kind: input, shape index: {}]
  %s1 = inlined_call_operand.vmem [shape: f32[128,32], index: 1, kind: input, shape index: {}]
  %s2 = inlined_call_operand.vmem [shape: f32[1,32], index: 2, kind: input, shape index: {}]
  %s3 = inlined_call_operand.vmem [shape: f32[2,32], index: 3, kind: input, shape index: {}]
  %s4 = inlined_call_operand.vmem [shape: f32[2,1], index: 4, kind: input, shape index: {}]
  %s5 = inlined_call_operand.hbm [shape: f32[2,8], index: 5, kind: output, shape index: {}]
  %s6 = sld [smem:[#allocation0]]
  $region30: #{tpu_custom_call.1} parent=0
    _
  %s8 = ssub.s32 1, %s6
  %s9 = scalar_select 0, %s8, %s6
  $region1: #{tpu_custom_call.1} parent=0
    #allocation2 [shape = 'u8[1024]{0}', space=vmem, size = 0x400, scoped, tag = 'output window, operand 0, single buffered']
    #allocation3 [shape = 's32[1]{0}', space=sflag, size = 0x4, scoped, tag = 'scoped memory for tpu_custom_call.1']
    %10 = vsyncpa [#allocation3], 0
    // Predicated region
    $region2: #{tpu_custom_call.1} parent=1 // pred_check
      _
    $region3: #{tpu_custom_call.1} parent=1 // pred_check_branch
      %12 = sbr.rel (0) target = $region5
    $region4: #{tpu_custom_call.1} parent=1 // pred_region
      _
    $region5: #{tpu_custom_call.1} parent=1 // pred_fallthru
      _
    // Predicated region
    $region6: #{tpu_custom_call.1} parent=1 // pred_check
      _
    $region7: #{tpu_custom_call.1} parent=1 // pred_check_branch
      %14 = sbr.rel (0) target = $region9
    $region8: #{tpu_custom_call.1} parent=1 // pred_region
      _
    $region9: #{tpu_custom_call.1} parent=1 // pred_fallthru
      _
    // Predicated region
    $region10: #{tpu_custom_call.1} parent=1 // pred_check
      _
    $region11: #{tpu_custom_call.1} parent=1 // pred_check_branch
      %16 = sbr.rel (0) target = $region13
    $region12: #{tpu_custom_call.1} parent=1 // pred_region
      _
    $region13: #{tpu_custom_call.1} parent=1 // pred_fallthru
      _
    // Predicated region
    $region14: #{tpu_custom_call.1} parent=1 // pred_check
      _
    $region15: #{tpu_custom_call.1} parent=1 // pred_check_branch
      %18 = sbr.rel (0) target = $region17
    $region16: #{tpu_custom_call.1} parent=1 // pred_region
      _
    $region17: #{tpu_custom_call.1} parent=1 // pred_fallthru
      _
    // Predicated region
    $region18: #{tpu_custom_call.1} parent=1 // pred_check
      _
    $region19: #{tpu_custom_call.1} parent=1 // pred_check_branch
      %20 = sbr.rel (0) target = $region21
    $region20: #{tpu_custom_call.1} parent=1 // pred_region
      _
    $region21: #{tpu_custom_call.1} parent=1 // pred_fallthru
      _
    %v21 = vld [vmem:[%s0] sm:$0xff]
    %v22 = vld [vmem:[%s0 + $0x8] sm:$0xff]
    %v23 = vld [vmem:[%s0 + $0x10] sm:$0xff]
    %v24 = vld [vmem:[%s0 + $0x18] sm:$0xff]
    %v25 = vld [vmem:[%s0 + $0x20] sm:$0xff]
    %v26 = vld [vmem:[%s0 + $0x28] sm:$0xff]
    %v27 = vld [vmem:[%s0 + $0x30] sm:$0xff]
    %v28 = vld [vmem:[%s0 + $0x38] sm:$0xff]
    %v29 = vld [vmem:[%s0 + $0x40] sm:$0xff]
    %v30 = vld [vmem:[%s0 + $0x48] sm:$0xff]
    %v31 = vld [vmem:[%s0 + $0x50] sm:$0xff]
    %v32 = vld [vmem:[%s0 + $0x58] sm:$0xff]
    %v33 = vld [vmem:[%s0 + $0x60] sm:$0xff]
    %v34 = vld [vmem:[%s0 + $0x68] sm:$0xff]
    %v35 = vld [vmem:[%s0 + $0x70] sm:$0xff]
    %v36 = vld [vmem:[%s0 + $0x78] sm:$0xff]
    %v37 = vld [vmem:[%s1] sm:$0xff]
    %v38 = vld [vmem:[%s1 + $0x8] sm:$0xff]
    %v39 = vld [vmem:[%s1 + $0x10] sm:$0xff]
    %v40 = vld [vmem:[%s1 + $0x18] sm:$0xff]
    %v41 = vld [vmem:[%s1 + $0x20] sm:$0xff]
    %v42 = vld [vmem:[%s1 + $0x28] sm:$0xff]
    %v43 = vld [vmem:[%s1 + $0x30] sm:$0xff]
    %v44 = vld [vmem:[%s1 + $0x38] sm:$0xff]
    %v45 = vld [vmem:[%s1 + $0x40] sm:$0xff]
    %v46 = vld [vmem:[%s1 + $0x48] sm:$0xff]
    %v47 = vld [vmem:[%s1 + $0x50] sm:$0xff]
    %v48 = vld [vmem:[%s1 + $0x58] sm:$0xff]
    %v49 = vld [vmem:[%s1 + $0x60] sm:$0xff]
    %v50 = vld [vmem:[%s1 + $0x68] sm:$0xff]
    %v51 = vld [vmem:[%s1 + $0x70] sm:$0xff]
    %v52 = vld [vmem:[%s1 + $0x78] sm:$0xff]
    %v53 = vld [vmem:[%s2] sm:$0x1]
    %v55 = vlaneseq
    %v56 = vshrl.u32 %v55, 7
    %v57 = vsub.s32 0, %v56
    %v58 = vrot.slane %v53, %v57
    %60 = vmatprep.subr.mxu0 0.0
    %61 = vmatpush1.msra.mxu0 %v37
    %62 = vmatprep.subr.mxu0 0.0
    %63 = vmatpush1.msra.mxu0 %v38
    %64 = vmatprep.subr.mxu0 0.0
    %65 = vmatpush1.msra.mxu0 %v39
    %66 = vmatprep.subr.mxu0 0.0
    %67 = vmatpush1.msra.mxu0 %v40
    %68 = vmatprep.subr.mxu0 0.0
    %69 = vmatpush1.msra.mxu0 %v41
    %70 = vmatprep.subr.mxu0 0.0
    %71 = vmatpush1.msra.mxu0 %v42
    %72 = vmatprep.subr.mxu0 0.0
    %73 = vmatpush1.msra.mxu0 %v43
    %74 = vmatprep.subr.mxu0 0.0
    %75 = vmatpush1.msra.mxu0 %v44
    %76 = vmatprep.subr.mxu0 0.0
    %77 = vmatpush1.msra.mxu0 %v45
    %78 = vmatprep.subr.mxu0 0.0
    %79 = vmatpush1.msra.mxu0 %v46
    %80 = vmatprep.subr.mxu0 0.0
    %81 = vmatpush1.msra.mxu0 %v47
    %82 = vmatprep.subr.mxu0 0.0
    %83 = vmatpush1.msra.mxu0 %v48
    %84 = vmatprep.subr.mxu0 0.0
    %85 = vmatpush1.msra.mxu0 %v49
    %86 = vmatprep.subr.mxu0 0.0
    %87 = vmatpush1.msra.mxu0 %v50
    %88 = vmatprep.subr.mxu0 0.0
    %89 = vmatpush1.msra.mxu0 %v51
    %90 = vmatprep.subr.mxu0 0.0
    %91 = vmatpush1.msra.mxu0 %v52
    %92 = vmatprep.subr.mxu0 0.0
    %93 = vmatpush1.msra.mxu0 0.0
    %94 = vmatprep.subr.mxu0 0.0
    %95 = vmatpush1.msra.mxu0 0.0
    %96 = vmatprep.subr.mxu0 0.0
    %97 = vmatpush1.msra.mxu0 0.0
    %98 = vmatprep.subr.mxu0 0.0
    %99 = vmatpush1.msra.mxu0 0.0
    %100 = vmatprep.subr.mxu0 0.0
    %101 = vmatpush1.msra.mxu0 0.0
    %102 = vmatprep.subr.mxu0 0.0
    %103 = vmatpush1.msra.mxu0 0.0
    %104 = vmatprep.subr.mxu0 0.0
    %105 = vmatpush1.msra.mxu0 0.0
    %106 = vmatprep.subr.mxu0 0.0
    %107 = vmatpush1.msra.mxu0 0.0
    %108 = vmatprep.subr.mxu0 0.0
    %109 = vmatpush1.msra.mxu0 0.0
    %110 = vmatprep.subr.mxu0 0.0
    %111 = vmatpush1.msra.mxu0 0.0
    %112 = vmatprep.subr.mxu0 0.0
    %113 = vmatpush1.msra.mxu0 0.0
    %114 = vmatprep.subr.mxu0 0.0
    %115 = vmatpush1.msra.mxu0 0.0
    %116 = vmatprep.subr.mxu0 0.0
    %117 = vmatpush1.msra.mxu0 0.0
    %118 = vmatprep.subr.mxu0 0.0
    %119 = vmatpush1.msra.mxu0 0.0
    %120 = vmatprep.subr.mxu0 0.0
    %121 = vmatpush1.msra.mxu0 0.0
    %122 = vmatprep.subr.mxu0 0.0
    %123 = vmatpush1.msra.mxu0 0.0
    %124 = vmatprep.mubr.f32.mxu0 0.0
    %125 = vmatmul.mubr.f32.gmra.mrb[0].mxu0 %v21
    %v126 = vpop.f32.mrb[0].mxu0
    %v127 = vadd.f32 %v58, %v126
    %v128 = vpop.f32.mrb[0].mxu0
    %129 = vmatprep.mubr.f32.mxu0 0.0
    %130 = vmatmul.mubr.f32.gmra.mrb[0].mxu0 %v22
    %v131 = vpop.f32.mrb[0].mxu0
    %v132 = vadd.f32 %v58, %v131
    %v133 = vpop.f32.mrb[0].mxu0
    %134 = vmatprep.mubr.f32.mxu0 0.0
    %135 = vmatmul.mubr.f32.gmra.mrb[0].mxu0 %v23
    %v136 = vpop.f32.mrb[0].mxu0
    %v137 = vadd.f32 %v58, %v136
    %v138 = vpop.f32.mrb[0].mxu0
    %139 = vmatprep.mubr.f32.mxu0 0.0
    %140 = vmatmul.mubr.f32.gmra.mrb[0].mxu0 %v24
    %v141 = vpop.f32.mrb[0].mxu0
    %v142 = vadd.f32 %v58, %v141
    %v143 = vpop.f32.mrb[0].mxu0
    %144 = vmatprep.mubr.f32.mxu0 0.0
    %145 = vmatmul.mubr.f32.gmra.mrb[0].mxu0 %v25
    %v146 = vpop.f32.mrb[0].mxu0
    %v147 = vadd.f32 %v58, %v146
    %v148 = vpop.f32.mrb[0].mxu0
    %149 = vmatprep.mubr.f32.mxu0 0.0
    %150 = vmatmul.mubr.f32.gmra.mrb[0].mxu0 %v26
    %v151 = vpop.f32.mrb[0].mxu0
    %v152 = vadd.f32 %v58, %v151
    %v153 = vpop.f32.mrb[0].mxu0
    %154 = vmatprep.mubr.f32.mxu0 0.0
    %155 = vmatmul.mubr.f32.gmra.mrb[0].mxu0 %v27
    %v156 = vpop.f32.mrb[0].mxu0
    %v157 = vadd.f32 %v58, %v156
    %v158 = vpop.f32.mrb[0].mxu0
    %159 = vmatprep.mubr.f32.mxu0 0.0
    %160 = vmatmul.mubr.f32.gmra.mrb[0].mxu0 %v28
    %v161 = vpop.f32.mrb[0].mxu0
    %v162 = vadd.f32 %v58, %v161
    %v163 = vpop.f32.mrb[0].mxu0
    %164 = vmatprep.mubr.f32.mxu0 0.0
    %165 = vmatmul.mubr.f32.gmra.mrb[0].mxu0 %v29
    %v166 = vpop.f32.mrb[0].mxu0
    %v167 = vadd.f32 %v58, %v166
    %v168 = vpop.f32.mrb[0].mxu0
    %169 = vmatprep.mubr.f32.mxu0 0.0
    %170 = vmatmul.mubr.f32.gmra.mrb[0].mxu0 %v30
    %v171 = vpop.f32.mrb[0].mxu0
    %v172 = vadd.f32 %v58, %v171
    %v173 = vpop.f32.mrb[0].mxu0
    %174 = vmatprep.mubr.f32.mxu0 0.0
    %175 = vmatmul.mubr.f32.gmra.mrb[0].mxu0 %v31
    %v176 = vpop.f32.mrb[0].mxu0
    %v177 = vadd.f32 %v58, %v176
    %v178 = vpop.f32.mrb[0].mxu0
    %179 = vmatprep.mubr.f32.mxu0 0.0
    %180 = vmatmul.mubr.f32.gmra.mrb[0].mxu0 %v32
    %v181 = vpop.f32.mrb[0].mxu0
    %v182 = vadd.f32 %v58, %v181
    %v183 = vpop.f32.mrb[0].mxu0
    %184 = vmatprep.mubr.f32.mxu0 0.0
    %185 = vmatmul.mubr.f32.gmra.mrb[0].mxu0 %v33
    %v186 = vpop.f32.mrb[0].mxu0
    %v187 = vadd.f32 %v58, %v186
    %v188 = vpop.f32.mrb[0].mxu0
    %189 = vmatprep.mubr.f32.mxu0 0.0
    %190 = vmatmul.mubr.f32.gmra.mrb[0].mxu0 %v34
    %v191 = vpop.f32.mrb[0].mxu0
    %v192 = vadd.f32 %v58, %v191
    %v193 = vpop.f32.mrb[0].mxu0
    %194 = vmatprep.mubr.f32.mxu0 0.0
    %195 = vmatmul.mubr.f32.gmra.mrb[0].mxu0 %v35
    %v196 = vpop.f32.mrb[0].mxu0
    %v197 = vadd.f32 %v58, %v196
    %v198 = vpop.f32.mrb[0].mxu0
    %199 = vmatprep.mubr.f32.mxu0 0.0
    %200 = vmatmul.mubr.f32.gmra.mrb[0].mxu0 %v36
    %v201 = vpop.f32.mrb[0].mxu0
    %v202 = vadd.f32 %v58, %v201
    %v203 = vpop.f32.mrb[0].mxu0
    %204 = vdwg.mxu0
    %v205 = vmax.f32 %v127, 0.0
    %v206 = vmax.f32 %v132, 0.0
    %v207 = vmax.f32 %v137, 0.0
    %v208 = vmax.f32 %v142, 0.0
    %v209 = vmax.f32 %v147, 0.0
    %v210 = vmax.f32 %v152, 0.0
    %v211 = vmax.f32 %v157, 0.0
    %v212 = vmax.f32 %v162, 0.0
    %v213 = vmax.f32 %v167, 0.0
    %v214 = vmax.f32 %v172, 0.0
    %v215 = vmax.f32 %v177, 0.0
    %v216 = vmax.f32 %v182, 0.0
    %v217 = vmax.f32 %v187, 0.0
    %v218 = vmax.f32 %v192, 0.0
    %v219 = vmax.f32 %v197, 0.0
    %v220 = vmax.f32 %v202, 0.0
    %v221 = vld [vmem:[%s3] sm:$0x3]
    %v222 = vld [vmem:[%s4] sm:$0x3]
    %224 = vset.pattern.permute.xlu0 0
    %225 = vperm.xlu0 %224, %v222
    %v226 = vpop.permute.xlu0 %225
    %vm228 = vcmask 261120
    %v230 = vsel %vm228, %v221, 0
    %v233 = vsel %vm228, %v205, 0
    %v236 = vsel %vm228, %v206, 0
    %v239 = vsel %vm228, %v207, 0
    %v242 = vsel %vm228, %v208, 0
    %v245 = vsel %vm228, %v209, 0
    %v248 = vsel %vm228, %v210, 0
    %v251 = vsel %vm228, %v211, 0
    %v254 = vsel %vm228, %v212, 0
    %v257 = vsel %vm228, %v213, 0
    %v260 = vsel %vm228, %v214, 0
    %v263 = vsel %vm228, %v215, 0
    %v266 = vsel %vm228, %v216, 0
    %v269 = vsel %vm228, %v217, 0
    %v272 = vsel %vm228, %v218, 0
    %v275 = vsel %vm228, %v219, 0
    %v278 = vsel %vm228, %v220, 0
    %280 = vmatprep.subr.mxu0 0.0
    %281 = vmatpush1.xpose.msra.mxu0 %v233
    %282 = vmatprep.subr.mxu0 0.0
    %283 = vmatpush1.xpose.msra.mxu0 %v236
    %284 = vmatprep.subr.mxu0 0.0
    %285 = vmatpush1.xpose.msra.mxu0 %v239
    %286 = vmatprep.subr.mxu0 0.0
    %287 = vmatpush1.xpose.msra.mxu0 %v242
    %288 = vmatprep.subr.mxu0 0.0
    %289 = vmatpush1.xpose.msra.mxu0 %v245
    %290 = vmatprep.subr.mxu0 0.0
    %291 = vmatpush1.xpose.msra.mxu0 %v248
    %292 = vmatprep.subr.mxu0 0.0
    %293 = vmatpush1.xpose.msra.mxu0 %v251
    %294 = vmatprep.subr.mxu0 0.0
    %295 = vmatpush1.xpose.msra.mxu0 %v254
    %296 = vmatprep.subr.mxu0 0.0
    %297 = vmatpush1.xpose.msra.mxu0 %v257
    %298 = vmatprep.subr.mxu0 0.0
    %299 = vmatpush1.xpose.msra.mxu0 %v260
    %300 = vmatprep.subr.mxu0 0.0
    %301 = vmatpush1.xpose.msra.mxu0 %v263
    %302 = vmatprep.subr.mxu0 0.0
    %303 = vmatpush1.xpose.msra.mxu0 %v266
    %304 = vmatprep.subr.mxu0 0.0
    %305 = vmatpush1.xpose.msra.mxu0 %v269
    %306 = vmatprep.subr.mxu0 0.0
    %307 = vmatpush1.xpose.msra.mxu0 %v272
    %308 = vmatprep.subr.mxu0 0.0
    %309 = vmatpush1.xpose.msra.mxu0 %v275
    %310 = vmatprep.subr.mxu0 0.0
    %311 = vmatpush1.xpose.msra.mxu0 %v278
    %312 = vmatprep.subr.mxu0 0.0
    %313 = vmatpush1.xpose.msra.mxu0 0.0
    %314 = vmatprep.subr.mxu0 0.0
    %315 = vmatpush1.xpose.msra.mxu0 0.0
    %316 = vmatprep.subr.mxu0 0.0
    %317 = vmatpush1.xpose.msra.mxu0 0.0
    %318 = vmatprep.subr.mxu0 0.0
    %319 = vmatpush1.xpose.msra.mxu0 0.0
    %320 = vmatprep.subr.mxu0 0.0
    %321 = vmatpush1.xpose.msra.mxu0 0.0
    %322 = vmatprep.subr.mxu0 0.0
    %323 = vmatpush1.xpose.msra.mxu0 0.0
    %324 = vmatprep.subr.mxu0 0.0
    %325 = vmatpush1.xpose.msra.mxu0 0.0
    %326 = vmatprep.subr.mxu0 0.0
    %327 = vmatpush1.xpose.msra.mxu0 0.0
    %328 = vmatprep.subr.mxu0 0.0
    %329 = vmatpush1.xpose.msra.mxu0 0.0
    %330 = vmatprep.subr.mxu0 0.0
    %331 = vmatpush1.xpose.msra.mxu0 0.0
    %332 = vmatprep.subr.mxu0 0.0
    %333 = vmatpush1.xpose.msra.mxu0 0.0
    %334 = vmatprep.subr.mxu0 0.0
    %335 = vmatpush1.xpose.msra.mxu0 0.0
    %336 = vmatprep.subr.mxu0 0.0
    %337 = vmatpush1.xpose.msra.mxu0 0.0
    %338 = vmatprep.subr.mxu0 0.0
    %339 = vmatpush1.xpose.msra.mxu0 0.0
    %340 = vmatprep.subr.mxu0 0.0
    %341 = vmatpush1.xpose.msra.mxu0 0.0
    %342 = vmatprep.subr.mxu0 0.0
    %343 = vmatpush1.xpose.msra.mxu0 0.0
    %344 = vmatprep.mubr.f32.mxu0 0.0
    %345 = vmatmul.mubr.f32.gmra.mrb[0].mxu0 %v230
    %v346 = vpop.f32.mrb[0].mxu0
    %v347 = vadd.f32 %v226, %v346
    %v348 = vpop.f32.mrb[0].mxu0
    %349 = vdwg.mxu0
    %v350 = vtanh.pop %v347
    %351 = vst [vmem:[#allocation2] sm:$0x3] %v350
    // Predicated region
    $region22: #{tpu_custom_call.1} parent=1 // pred_check
      _
    $region23: #{tpu_custom_call.1} parent=1 // pred_check_branch
      %353 = sbr.rel (0) target = $region25
    $region24: #{tpu_custom_call.1} parent=1 // pred_region
      %s355 = ssub.s32 32, 32
      %356 = vsyncadd [#allocation3], %s355
      %s358 = sshll.u32 [#allocation2], 4
      %s359 = int_to_ptr.vmem [resolvable:$true] %s358
      %361 = dma.vmem_to_hbm [thread:$0]  %s359, 32, %s5, [#allocation3]
    $region25: #{tpu_custom_call.1} parent=1 // pred_fallthru
      _
    // Predicated region
    $region26: #{tpu_custom_call.1} parent=1 // pred_check
      _
    $region27: #{tpu_custom_call.1} parent=1 // pred_check_branch
      %363 = sbr.rel (0) target = $region29
    $region28: #{tpu_custom_call.1} parent=1 // pred_region
      %364 = dma.done [#allocation3], 32
    $region29: #{tpu_custom_call.1} parent=1 // pred_fallthru
      _
    %365 = vsyncpa [#allocation3], 1

</llo_original>
